<compile_context>
chip_gen: v7x
topology: tpu7x:2x2x1
jax: 0.10.0
libtpu: 0.0.40
codegen_flags: <defaults>
</compile_context>

<pallas_src>
import jax
import jax.numpy as jnp
from jax.experimental import pallas as pl
from jax.experimental.pallas import tpu as pltpu  # noqa: F401  (TPU backend assumed)

# ---- small demo config (consistent with the module's structure) ----
B = 8          # batch (multiple of the f32 sublane quantum 8)
DIN = 64       # input_dim
L = 64         # latent_dim
G = 8          # graph_size
K = 4          # mixture components of StructuredPrior
DN = L // G    # per-node feature dim


# ---------------------------------------------------------------------------
# Fused kernel: encoder MLP -> (z = mu) -> 3 composed GNN layers -> intervention MLP
# Single launch, no grid, all operands whole-array resident in VMEM (~180 KB total).
# ---------------------------------------------------------------------------
def _causal_fused_kernel(x_ref,
                         ew1_ref, eb1_ref, ew2_ref, eb2_ref,
                         m0_ref, t0_ref, m1_ref, t1_ref, m2_ref, t2_ref,
                         iw1_ref, ib1_ref, iw2_ref, ib2_ref,
                         h_ref, zint_ref):
    # encoder: Linear -> ReLU -> Linear            (B, DIN) -> (B, 2L)
    x = x_ref[...]
    h = jnp.dot(x, ew1_ref[...], preferred_element_type=jnp.float32) + eb1_ref[...]
    h = jnp.maximum(h, 0.0)
    h = jnp.dot(h, ew2_ref[...], preferred_element_type=jnp.float32) + eb2_ref[...]
    h_ref[...] = h.astype(h_ref.dtype)           # lane-dense (B, 128) slab = [mu | logvar]

    # reparameterize (eval mode): z = mu (first L lanes)
    z = h[:, :L]                                 # (B, L)

    # 3 GNN layers, each folded into one lane-dense matmul:
    #   z <- z @ (kron(adj^T, W_l) + I) + tile(b_l, G)
    for m_ref, t_ref in ((m0_ref, t0_ref), (m1_ref, t1_ref), (m2_ref, t2_ref)):
        z = jnp.dot(z, m_ref[...], preferred_element_type=jnp.float32) + t_ref[...]

    # intervention: Linear -> ReLU -> Linear -> Tanh
    zi = jnp.dot(z, iw1_ref[...], preferred_element_type=jnp.float32) + ib1_ref[...]
    zi = jnp.maximum(zi, 0.0)
    zi = jnp.dot(zi, iw2_ref[...], preferred_element_type=jnp.float32) + ib2_ref[...]
    zint_ref[...] = jnp.tanh(zi).astype(zint_ref.dtype)


# ---------------------------------------------------------------------------
# StructuredPrior adjacency + GNN operator folding (tiny per-forward XLA glue;
# a dedicated pallas_call here is pure launch overhead per the perf review).
# ---------------------------------------------------------------------------
def structured_prior_adj(pi_param, p_param, key):
    pi = jax.nn.softmax(pi_param)                                  # (K,)
    p = jax.nn.sigmoid(p_param)                                    # (K,)
    u = jax.random.uniform(key, (K, G, G), dtype=jnp.float32)
    masks = (u < p[:, None, None]).astype(jnp.float32)             # bernoulli(p_k)
    adj = jnp.sum(pi[:, None, None] * masks, axis=0)               # (G, G)
    return jax.nn.sigmoid(adj)


def _gnn_operators(adj, gnn_w, gnn_b):
    # Fold the linear GNN layer  z <- (adj @ z) @ W + b + z  (per node) into a single
    # flat-latent operator:  M = kron(adj^T, W) + I_L,  bias_tiled = tile(b, G).
    eye = jnp.eye(L, dtype=jnp.float32)
    ms, ts = [], []
    for w, b in zip(gnn_w, gnn_b):
        ms.append(jnp.kron(adj.T, w) + eye)                        # (L, L)
        ts.append(jnp.tile(b, (1, G)))                             # (1, L)
    return ms, ts


# ---------------------------------------------------------------------------
# Full forward (single pallas_call)
# ---------------------------------------------------------------------------
@jax.jit
def causal_forward(x, params, key):
    adj = structured_prior_adj(params["pi"], params["p"], key)
    (m0, m1, m2), (t0, t1, t2) = _gnn_operators(adj, params["gnn_w"], params["gnn_b"])

    h, z_int = pl.pallas_call(
        _causal_fused_kernel,
        out_shape=(jax.ShapeDtypeStruct((B, 2 * L), jnp.float32),   # encoder slab [mu|logvar]
                   jax.ShapeDtypeStruct((B, L), jnp.float32)),      # intervention output
    )(x,
      params["enc_w1"], params["enc_b1"], params["enc_w2"], params["enc_b2"],
      m0, t0, m1, t1, m2, t2,
      params["int_w1"], params["int_b1"], params["int_w2"], params["int_b2"])

    mu, logvar = h[:, :L], h[:, L:]              # chunk(2, dim=-1) glue
    return z_int, mu, logvar


# ---------------------------------------------------------------------------
# Pure-JAX reference (mirrors the PyTorch forward, eval mode) for cross-checking.
# ---------------------------------------------------------------------------
def causal_reference(x, params, key):
    adj = structured_prior_adj(params["pi"], params["p"], key)
    h = jnp.maximum(x @ params["enc_w1"] + params["enc_b1"], 0.0)
    h = h @ params["enc_w2"] + params["enc_b2"]
    mu, logvar = h[:, :L], h[:, L:]
    z = mu.reshape(B, G, DN)
    for w, b in zip(params["gnn_w"], params["gnn_b"]):
        z_msg = jnp.einsum("gh,bhd->bgd", adj, z)
        z = jnp.einsum("bgd,de->bge", z_msg, w) + b + z
    zf = z.reshape(B, L)
    zi = jnp.maximum(zf @ params["int_w1"] + params["int_b1"], 0.0)
    zi = jnp.tanh(zi @ params["int_w2"] + params["int_b2"])
    return zi, mu, logvar


# ---------------------------------------------------------------------------
# Parameter init (deterministic, in-script)
# ---------------------------------------------------------------------------
def init_params(key):
    ks = list(jax.random.split(key, 16))

    def lin(kw, kb, fan_in, fan_out):
        w = jax.random.normal(kw, (fan_in, fan_out), jnp.float32) / jnp.sqrt(
            jnp.float32(fan_in))
        b = 0.01 * jax.random.normal(kb, (1, fan_out), jnp.float32)
        return w, b

    params = {}
    params["enc_w1"], params["enc_b1"] = lin(ks[0], ks[1], DIN, 2 * L)
    params["enc_w2"], params["enc_b2"] = lin(ks[2], ks[3], 2 * L, 2 * L)
    gw, gb = [], []
    for i in range(3):
        w, b = lin(ks[4 + 2 * i], ks[5 + 2 * i], DN, DN)
        gw.append(w)
        gb.append(b)
    params["gnn_w"], params["gnn_b"] = gw, gb
    params["int_w1"], params["int_b1"] = lin(ks[10], ks[11], L, L)
    params["int_w2"], params["int_b2"] = lin(ks[12], ks[13], L, L)
    params["pi"] = jnp.ones((K,), jnp.float32) / K                 # StructuredPrior.pi
    params["p"] = jax.random.uniform(ks[14], (K,), jnp.float32)    # StructuredPrior.p
    return params


if __name__ == "__main__":
    root = jax.random.PRNGKey(0)
    pkey, xkey, skey = jax.random.split(root, 3)
    params = init_params(pkey)
    x = jax.random.normal(xkey, (B, DIN), jnp.float32)

    z_int, mu, logvar = causal_forward(x, params, skey)
    jax.block_until_ready((z_int, mu, logvar))

    # shape / finiteness / numerics checks against the pure-JAX reference
    zr, mur, lvr = causal_reference(x, params, skey)
    assert z_int.shape == (B, L) and mu.shape == (B, L) and logvar.shape == (B, L)
    assert jnp.all(jnp.isfinite(z_int)) and jnp.all(jnp.isfinite(mu))
    assert jnp.allclose(mu, mur, atol=5e-2, rtol=5e-2)
    assert jnp.allclose(logvar, lvr, atol=5e-2, rtol=5e-2)
    assert jnp.allclose(z_int, zr, atol=5e-2, rtol=5e-2)
    print("KERNEL_OK")
</pallas_src>

<mosaic_0001>
module attributes {stable_mosaic.version = 11 : i64} {
  func.func @_causal_fused_kernel(%arg0: memref<8x64xf32, #tpu.memory_space<vmem>>, %arg1: memref<64x128xf32, #tpu.memory_space<vmem>>, %arg2: memref<1x128xf32, #tpu.memory_space<vmem>>, %arg3: memref<128x128xf32, #tpu.memory_space<vmem>>, %arg4: memref<1x128xf32, #tpu.memory_space<vmem>>, %arg5: memref<64x64xf32, #tpu.memory_space<vmem>>, %arg6: memref<1x64xf32, #tpu.memory_space<vmem>>, %arg7: memref<64x64xf32, #tpu.memory_space<vmem>>, %arg8: memref<1x64xf32, #tpu.memory_space<vmem>>, %arg9: memref<64x64xf32, #tpu.memory_space<vmem>>, %arg10: memref<1x64xf32, #tpu.memory_space<vmem>>, %arg11: memref<64x64xf32, #tpu.memory_space<vmem>>, %arg12: memref<1x64xf32, #tpu.memory_space<vmem>>, %arg13: memref<64x64xf32, #tpu.memory_space<vmem>>, %arg14: memref<1x64xf32, #tpu.memory_space<vmem>>, %arg15: memref<8x128xf32, #tpu.memory_space<vmem>>, %arg16: memref<8x64xf32, #tpu.memory_space<vmem>>) attributes {dimension_semantics = [], scalar_prefetch = 0 : i64, scratch_operands = 0 : i64, tpu.core_type = #tpu.core_type<tc>} {
    %c0 = arith.constant 0 : index
    %c0_0 = arith.constant 0 : index
    %0 = vector.load %arg0[%c0, %c0_0] : memref<8x64xf32, #tpu.memory_space<vmem>>, vector<8x64xf32>
    %c0_1 = arith.constant 0 : index
    %c0_2 = arith.constant 0 : index
    %1 = vector.load %arg1[%c0_1, %c0_2] : memref<64x128xf32, #tpu.memory_space<vmem>>, vector<64x128xf32>
    %cst = arith.constant dense<0.000000e+00> : vector<8x128xf32>
    %2 = tpu.matmul %0, %1, %cst {dimension_numbers = #tpu.dot_dimension_numbers<[1], [0], [0], [1], [0, 0, 1, 1], [], []>} : vector<8x64xf32>, vector<64x128xf32>, vector<8x128xf32> -> vector<8x128xf32>
    %c0_3 = arith.constant 0 : index
    %c0_4 = arith.constant 0 : index
    %3 = vector.load %arg2[%c0_3, %c0_4] : memref<1x128xf32, #tpu.memory_space<vmem>>, vector<1x128xf32>
    %4 = vector.broadcast %3 : vector<1x128xf32> to vector<8x128xf32>
    %5 = arith.addf %2, %4 : vector<8x128xf32>
    %cst_5 = arith.constant 0.000000e+00 : f32
    %6 = vector.broadcast %cst_5 : f32 to vector<8x128xf32>
    %7 = arith.maximumf %5, %6 : vector<8x128xf32>
    %c0_6 = arith.constant 0 : index
    %c0_7 = arith.constant 0 : index
    %8 = vector.load %arg3[%c0_6, %c0_7] : memref<128x128xf32, #tpu.memory_space<vmem>>, vector<128x128xf32>
    %cst_8 = arith.constant dense<0.000000e+00> : vector<8x128xf32>
    %9 = tpu.matmul %7, %8, %cst_8 {dimension_numbers = #tpu.dot_dimension_numbers<[1], [0], [0], [1], [0, 0, 1, 1], [], []>} : vector<8x128xf32>, vector<128x128xf32>, vector<8x128xf32> -> vector<8x128xf32>
    %c0_9 = arith.constant 0 : index
    %c0_10 = arith.constant 0 : index
    %10 = vector.load %arg4[%c0_9, %c0_10] : memref<1x128xf32, #tpu.memory_space<vmem>>, vector<1x128xf32>
    %11 = vector.broadcast %10 : vector<1x128xf32> to vector<8x128xf32>
    %12 = arith.addf %9, %11 : vector<8x128xf32>
    %c0_11 = arith.constant 0 : index
    %c0_12 = arith.constant 0 : index
    %13 = vector.load %arg15[%c0_11, %c0_12] : memref<8x128xf32, #tpu.memory_space<vmem>>, vector<8x128xf32>
    tpu.vector_store %arg15[%c0_11, %c0_12], %12 {strides = array<i32>} : memref<8x128xf32, #tpu.memory_space<vmem>>, vector<8x128xf32>,
    %14 = vector.extract_strided_slice %12 {offsets = [0, 0], sizes = [8, 64], strides = [1, 1]} : vector<8x128xf32> to vector<8x64xf32>
    %c0_13 = arith.constant 0 : index
    %c0_14 = arith.constant 0 : index
    %15 = vector.load %arg5[%c0_13, %c0_14] : memref<64x64xf32, #tpu.memory_space<vmem>>, vector<64x64xf32>
    %cst_15 = arith.constant dense<0.000000e+00> : vector<8x64xf32>
    %16 = tpu.matmul %14, %15, %cst_15 {dimension_numbers = #tpu.dot_dimension_numbers<[1], [0], [0], [1], [0, 0, 1, 1], [], []>} : vector<8x64xf32>, vector<64x64xf32>, vector<8x64xf32> -> vector<8x64xf32>
    %c0_16 = arith.constant 0 : index
    %c0_17 = arith.constant 0 : index
    %17 = vector.load %arg6[%c0_16, %c0_17] : memref<1x64xf32, #tpu.memory_space<vmem>>, vector<1x64xf32>
    %18 = vector.broadcast %17 : vector<1x64xf32> to vector<8x64xf32>
    %19 = arith.addf %16, %18 : vector<8x64xf32>
    %c0_18 = arith.constant 0 : index
    %c0_19 = arith.constant 0 : index
    %20 = vector.load %arg7[%c0_18, %c0_19] : memref<64x64xf32, #tpu.memory_space<vmem>>, vector<64x64xf32>
    %cst_20 = arith.constant dense<0.000000e+00> : vector<8x64xf32>
    %21 = tpu.matmul %19, %20, %cst_20 {dimension_numbers = #tpu.dot_dimension_numbers<[1], [0], [0], [1], [0, 0, 1, 1], [], []>} : vector<8x64xf32>, vector<64x64xf32>, vector<8x64xf32> -> vector<8x64xf32>
    %c0_21 = arith.constant 0 : index
    %c0_22 = arith.constant 0 : index
    %22 = vector.load %arg8[%c0_21, %c0_22] : memref<1x64xf32, #tpu.memory_space<vmem>>, vector<1x64xf32>
    %23 = vector.broadcast %22 : vector<1x64xf32> to vector<8x64xf32>
    %24 = arith.addf %21, %23 : vector<8x64xf32>
    %c0_23 = arith.constant 0 : index
    %c0_24 = arith.constant 0 : index
    %25 = vector.load %arg9[%c0_23, %c0_24] : memref<64x64xf32, #tpu.memory_space<vmem>>, vector<64x64xf32>
    %cst_25 = arith.constant dense<0.000000e+00> : vector<8x64xf32>
    %26 = tpu.matmul %24, %25, %cst_25 {dimension_numbers = #tpu.dot_dimension_numbers<[1], [0], [0], [1], [0, 0, 1, 1], [], []>} : vector<8x64xf32>, vector<64x64xf32>, vector<8x64xf32> -> vector<8x64xf32>
    %c0_26 = arith.constant 0 : index
    %c0_27 = arith.constant 0 : index
    %27 = vector.load %arg10[%c0_26, %c0_27] : memref<1x64xf32, #tpu.memory_space<vmem>>, vector<1x64xf32>
    %28 = vector.broadcast %27 : vector<1x64xf32> to vector<8x64xf32>
    %29 = arith.addf %26, %28 : vector<8x64xf32>
    %c0_28 = arith.constant 0 : index
    %c0_29 = arith.constant 0 : index
    %30 = vector.load %arg11[%c0_28, %c0_29] : memref<64x64xf32, #tpu.memory_space<vmem>>, vector<64x64xf32>
    %cst_30 = arith.constant dense<0.000000e+00> : vector<8x64xf32>
    %31 = tpu.matmul %29, %30, %cst_30 {dimension_numbers = #tpu.dot_dimension_numbers<[1], [0], [0], [1], [0, 0, 1, 1], [], []>} : vector<8x64xf32>, vector<64x64xf32>, vector<8x64xf32> -> vector<8x64xf32>
    %c0_31 = arith.constant 0 : index
    %c0_32 = arith.constant 0 : index
    %32 = vector.load %arg12[%c0_31, %c0_32] : memref<1x64xf32, #tpu.memory_space<vmem>>, vector<1x64xf32>
    %33 = vector.broadcast %32 : vector<1x64xf32> to vector<8x64xf32>
    %34 = arith.addf %31, %33 : vector<8x64xf32>
    %cst_33 = arith.constant 0.000000e+00 : f32
    %35 = vector.broadcast %cst_33 : f32 to vector<8x64xf32>
    %36 = arith.maximumf %34, %35 : vector<8x64xf32>
    %c0_34 = arith.constant 0 : index
    %c0_35 = arith.constant 0 : index
    %37 = vector.load %arg13[%c0_34, %c0_35] : memref<64x64xf32, #tpu.memory_space<vmem>>, vector<64x64xf32>
    %cst_36 = arith.constant dense<0.000000e+00> : vector<8x64xf32>
    %38 = tpu.matmul %36, %37, %cst_36 {dimension_numbers = #tpu.dot_dimension_numbers<[1], [0], [0], [1], [0, 0, 1, 1], [], []>} : vector<8x64xf32>, vector<64x64xf32>, vector<8x64xf32> -> vector<8x64xf32>
    %c0_37 = arith.constant 0 : index
    %c0_38 = arith.constant 0 : index
    %39 = vector.load %arg14[%c0_37, %c0_38] : memref<1x64xf32, #tpu.memory_space<vmem>>, vector<1x64xf32>
    %40 = vector.broadcast %39 : vector<1x64xf32> to vector<8x64xf32>
    %41 = arith.addf %38, %40 : vector<8x64xf32>
    %42 = math.tanh %41 : vector<8x64xf32>
    %c0_39 = arith.constant 0 : index
    %c0_40 = arith.constant 0 : index
    %43 = vector.load %arg16[%c0_39, %c0_40] : memref<8x64xf32, #tpu.memory_space<vmem>>, vector<8x64xf32>
    tpu.vector_store %arg16[%c0_39, %c0_40], %42 {strides = array<i32>} : memref<8x64xf32, #tpu.memory_space<vmem>>, vector<8x64xf32>,
    return
  }
}

</mosaic_0001>

<llo_original>
// kernel: causal_forward.1
$region0: #{causal_forward.1}
  #allocation0 [shape = 'u32[]', space=smem, size = 0x4, offset = 0x4, fixed_abs, tag = 'smem constant byte address 0x4 - core index']
  #allocation1 [shape = 'u32[144,128]{1,0:T(1,128)}', space=vmem, size = 0x12000, scoped, tag = 'internal scratch']
  %s0 = inlined_call_operand.vmem [shape: f32[8,64], index: 0, kind: input, shape index: {}]
  %s1 = inlined_call_operand.vmem [shape: f32[64,128], index: 1, kind: input, shape index: {}]
  %s2 = inlined_call_operand.vmem [shape: f32[1,128], index: 2, kind: input, shape index: {}]
  %s3 = inlined_call_operand.vmem [shape: f32[128,128], index: 3, kind: input, shape index: {}]
  %s4 = inlined_call_operand.vmem [shape: f32[1,128], index: 4, kind: input, shape index: {}]
  %s5 = inlined_call_operand.vmem [shape: f32[64,64], index: 5, kind: input, shape index: {}]
  %s6 = inlined_call_operand.vmem [shape: f32[1,64], index: 6, kind: input, shape index: {}]
  %s7 = inlined_call_operand.vmem [shape: f32[64,64], index: 7, kind: input, shape index: {}]
  %s8 = inlined_call_operand.vmem [shape: f32[1,64], index: 8, kind: input, shape index: {}]
  %s9 = inlined_call_operand.vmem [shape: f32[64,64], index: 9, kind: input, shape index: {}]
  %s10 = inlined_call_operand.vmem [shape: f32[1,64], index: 10, kind: input, shape index: {}]
  %s11 = inlined_call_operand.vmem [shape: f32[64,64], index: 11, kind: input, shape index: {}]
  %s12 = inlined_call_operand.vmem [shape: f32[1,64], index: 12, kind: input, shape index: {}]
  %s13 = inlined_call_operand.vmem [shape: f32[64,64], index: 13, kind: input, shape index: {}]
  %s14 = inlined_call_operand.vmem [shape: f32[1,64], index: 14, kind: input, shape index: {}]
  %s15 = inlined_call_operand.vmem [shape: f32[8,128], index: 15, kind: output, shape index: {0}]
  %s16 = inlined_call_operand.hbm [shape: f32[8,64], index: 16, kind: output, shape index: {1}]
  %17 = xla_tuple %s15, %s16
  %s18 = sld [smem:[#allocation0]]
  $region78: #{causal_forward.1} parent=0
    _
  %s20 = ssub.s32 1, %s18
  %s21 = scalar_select 0, %s20, %s18
  $region1: #{causal_forward.1} parent=0
    #allocation2 [shape = 'u8[4096]{0}', space=vmem, size = 0x1000, scoped, tag = 'output window, operand 1, single buffered']
    #allocation3 [shape = 's32[1]{0}', space=sflag, size = 0x4, scoped, tag = 'scoped memory for causal_forward.1']
    %22 = vsyncpa [#allocation3], 0
    // Predicated region
    $region2: #{causal_forward.1} parent=1 // pred_check
      _
    $region3: #{causal_forward.1} parent=1 // pred_check_branch
      %24 = sbr.rel (0) target = $region5
    $region4: #{causal_forward.1} parent=1 // pred_region
      _
    $region5: #{causal_forward.1} parent=1 // pred_fallthru
      _
    // Predicated region
    $region6: #{causal_forward.1} parent=1 // pred_check
      _
    $region7: #{causal_forward.1} parent=1 // pred_check_branch
      %26 = sbr.rel (0) target = $region9
    $region8: #{causal_forward.1} parent=1 // pred_region
      _
    $region9: #{causal_forward.1} parent=1 // pred_fallthru
      _
    // Predicated region
    $region10: #{causal_forward.1} parent=1 // pred_check
      _
    $region11: #{causal_forward.1} parent=1 // pred_check_branch
      %28 = sbr.rel (0) target = $region13
    $region12: #{causal_forward.1} parent=1 // pred_region
      _
    $region13: #{causal_forward.1} parent=1 // pred_fallthru
      _
    // Predicated region
    $region14: #{causal_forward.1} parent=1 // pred_check
      _
    $region15: #{causal_forward.1} parent=1 // pred_check_branch
      %30 = sbr.rel (0) target = $region17
    $region16: #{causal_forward.1} parent=1 // pred_region
      _
    $region17: #{causal_forward.1} parent=1 // pred_fallthru
      _
    // Predicated region
    $region18: #{causal_forward.1} parent=1 // pred_check
      _
    $region19: #{causal_forward.1} parent=1 // pred_check_branch
      %32 = sbr.rel (0) target = $region21
    $region20: #{causal_forward.1} parent=1 // pred_region
      _
    $region21: #{causal_forward.1} parent=1 // pred_fallthru
      _
    // Predicated region
    $region22: #{causal_forward.1} parent=1 // pred_check
      _
    $region23: #{causal_forward.1} parent=1 // pred_check_branch
      %34 = sbr.rel (0) target = $region25
    $region24: #{causal_forward.1} parent=1 // pred_region
      _
    $region25: #{causal_forward.1} parent=1 // pred_fallthru
      _
    // Predicated region
    $region26: #{causal_forward.1} parent=1 // pred_check
      _
    $region27: #{causal_forward.1} parent=1 // pred_check_branch
      %36 = sbr.rel (0) target = $region29
    $region28: #{causal_forward.1} parent=1 // pred_region
      _
    $region29: #{causal_forward.1} parent=1 // pred_fallthru
      _
    // Predicated region
    $region30: #{causal_forward.1} parent=1 // pred_check
      _
    $region31: #{causal_forward.1} parent=1 // pred_check_branch
      %38 = sbr.rel (0) target = $region33
    $region32: #{causal_forward.1} parent=1 // pred_region
      _
    $region33: #{causal_forward.1} parent=1 // pred_fallthru
      _
    // Predicated region
    $region34: #{causal_forward.1} parent=1 // pred_check
      _
    $region35: #{causal_forward.1} parent=1 // pred_check_branch
      %40 = sbr.rel (0) target = $region37
    $region36: #{causal_forward.1} parent=1 // pred_region
      _
    $region37: #{causal_forward.1} parent=1 // pred_fallthru
      _
    // Predicated region
    $region38: #{causal_forward.1} parent=1 // pred_check
      _
    $region39: #{causal_forward.1} parent=1 // pred_check_branch
      %42 = sbr.rel (0) target = $region41
    $region40: #{causal_forward.1} parent=1 // pred_region
      _
    $region41: #{causal_forward.1} parent=1 // pred_fallthru
      _
    // Predicated region
    $region42: #{causal_forward.1} parent=1 // pred_check
      _
    $region43: #{causal_forward.1} parent=1 // pred_check_branch
      %44 = sbr.rel (0) target = $region45
    $region44: #{causal_forward.1} parent=1 // pred_region
      _
    $region45: #{causal_forward.1} parent=1 // pred_fallthru
      _
    // Predicated region
    $region46: #{causal_forward.1} parent=1 // pred_check
      _
    $region47: #{causal_forward.1} parent=1 // pred_check_branch
      %46 = sbr.rel (0) target = $region49
    $region48: #{causal_forward.1} parent=1 // pred_region
      _
    $region49: #{causal_forward.1} parent=1 // pred_fallthru
      _
    // Predicated region
    $region50: #{causal_forward.1} parent=1 // pred_check
      _
    $region51: #{causal_forward.1} parent=1 // pred_check_branch
      %48 = sbr.rel (0) target = $region53
    $region52: #{causal_forward.1} parent=1 // pred_region
      _
    $region53: #{causal_forward.1} parent=1 // pred_fallthru
      _
    // Predicated region
    $region54: #{causal_forward.1} parent=1 // pred_check
      _
    $region55: #{causal_forward.1} parent=1 // pred_check_branch
      %50 = sbr.rel (0) target = $region57
    $region56: #{causal_forward.1} parent=1 // pred_region
      _
    $region57: #{causal_forward.1} parent=1 // pred_fallthru
      _
    // Predicated region
    $region58: #{causal_forward.1} parent=1 // pred_check
      _
    $region59: #{causal_forward.1} parent=1 // pred_check_branch
      %52 = sbr.rel (0) target = $region61
    $region60: #{causal_forward.1} parent=1 // pred_region
      _
    $region61: #{causal_forward.1} parent=1 // pred_fallthru
      _
    %v53 = vld [vmem:[%s0] sm:$0xff]
    %v54 = vld [vmem:[%s1] sm:$0xff]
    %v55 = vld [vmem:[%s1 + $0x8] sm:$0xff]
    %v56 = vld [vmem:[%s1 + $0x10] sm:$0xff]
    %v57 = vld [vmem:[%s1 + $0x18] sm:$0xff]
    %v58 = vld [vmem:[%s1 + $0x20] sm:$0xff]
    %v59 = vld [vmem:[%s1 + $0x28] sm:$0xff]
    %v60 = vld [vmem:[%s1 + $0x30] sm:$0xff]
    %v61 = vld [vmem:[%s1 + $0x38] sm:$0xff]
    %v62 = vld [vmem:[%s2] sm:$0x1]
    %v64 = vlaneseq
    %v65 = vshrl.u32 %v64, 7
    %v66 = vsub.s32 0, %v65
    %v67 = vrot.slane %v62, %v66
    %vm69 = vcmask 523264
    %v71 = vsel %vm69, %v53, 0
    %73 = vmatprep.subr.mxu0 0.0
    %74 = vmatpush1.msra.mxu0 %v54
    %75 = vmatprep.subr.mxu0 0.0
    %76 = vmatpush1.msra.mxu0 %v55
    %77 = vmatprep.subr.mxu0 0.0
    %78 = vmatpush1.msra.mxu0 %v56
    %79 = vmatprep.subr.mxu0 0.0
    %80 = vmatpush1.msra.mxu0 %v57
    %81 = vmatprep.subr.mxu0 0.0
    %82 = vmatpush1.msra.mxu0 %v58
    %83 = vmatprep.subr.mxu0 0.0
    %84 = vmatpush1.msra.mxu0 %v59
    %85 = vmatprep.subr.mxu0 0.0
    %86 = vmatpush1.msra.mxu0 %v60
    %87 = vmatprep.subr.mxu0 0.0
    %88 = vmatpush1.msra.mxu0 %v61
    %89 = vmatprep.subr.mxu0 0.0
    %90 = vmatpush1.msra.mxu0 0.0
    %91 = vmatprep.subr.mxu0 0.0
    %92 = vmatpush1.msra.mxu0 0.0
    %93 = vmatprep.subr.mxu0 0.0
    %94 = vmatpush1.msra.mxu0 0.0
    %95 = vmatprep.subr.mxu0 0.0
    %96 = vmatpush1.msra.mxu0 0.0
    %97 = vmatprep.subr.mxu0 0.0
    %98 = vmatpush1.msra.mxu0 0.0
    %99 = vmatprep.subr.mxu0 0.0
    %100 = vmatpush1.msra.mxu0 0.0
    %101 = vmatprep.subr.mxu0 0.0
    %102 = vmatpush1.msra.mxu0 0.0
    %103 = vmatprep.subr.mxu0 0.0
    %104 = vmatpush1.msra.mxu0 0.0
    %105 = vmatprep.subr.mxu0 0.0
    %106 = vmatpush1.msra.mxu0 0.0
    %107 = vmatprep.subr.mxu0 0.0
    %108 = vmatpush1.msra.mxu0 0.0
    %109 = vmatprep.subr.mxu0 0.0
    %110 = vmatpush1.msra.mxu0 0.0
    %111 = vmatprep.subr.mxu0 0.0
    %112 = vmatpush1.msra.mxu0 0.0
    %113 = vmatprep.subr.mxu0 0.0
    %114 = vmatpush1.msra.mxu0 0.0
    %115 = vmatprep.subr.mxu0 0.0
    %116 = vmatpush1.msra.mxu0 0.0
    %117 = vmatprep.subr.mxu0 0.0
    %118 = vmatpush1.msra.mxu0 0.0
    %119 = vmatprep.subr.mxu0 0.0
    %120 = vmatpush1.msra.mxu0 0.0
    %121 = vmatprep.subr.mxu0 0.0
    %122 = vmatpush1.msra.mxu0 0.0
    %123 = vmatprep.subr.mxu0 0.0
    %124 = vmatpush1.msra.mxu0 0.0
    %125 = vmatprep.subr.mxu0 0.0
    %126 = vmatpush1.msra.mxu0 0.0
    %127 = vmatprep.subr.mxu0 0.0
    %128 = vmatpush1.msra.mxu0 0.0
    %129 = vmatprep.subr.mxu0 0.0
    %130 = vmatpush1.msra.mxu0 0.0
    %131 = vmatprep.subr.mxu0 0.0
    %132 = vmatpush1.msra.mxu0 0.0
    %133 = vmatprep.subr.mxu0 0.0
    %134 = vmatpush1.msra.mxu0 0.0
    %135 = vmatprep.subr.mxu0 0.0
    %136 = vmatpush1.msra.mxu0 0.0
    %137 = vmatprep.mubr.f32.mxu0 0.0
    %138 = vmatmul.mubr.f32.gmra.mrb[0].mxu0 %v71
    %v139 = vpop.f32.mrb[0].mxu0
    %v140 = vadd.f32 %v67, %v139
    %v141 = vpop.f32.mrb[0].mxu0
    %142 = vdwg.mxu0
    %v143 = vmax.f32 %v140, 0.0
    %v144 = vld [vmem:[%s3] sm:$0xff]
    %v145 = vld [vmem:[%s3 + $0x8] sm:$0xff]
    %v146 = vld [vmem:[%s3 + $0x10] sm:$0xff]
    %v147 = vld [vmem:[%s3 + $0x18] sm:$0xff]
    %v148 = vld [vmem:[%s3 + $0x20] sm:$0xff]
    %v149 = vld [vmem:[%s3 + $0x28] sm:$0xff]
    %v150 = vld [vmem:[%s3 + $0x30] sm:$0xff]
    %v151 = vld [vmem:[%s3 + $0x38] sm:$0xff]
    %v152 = vld [vmem:[%s3 + $0x40] sm:$0xff]
    %v153 = vld [vmem:[%s3 + $0x48] sm:$0xff]
    %v154 = vld [vmem:[%s3 + $0x50] sm:$0xff]
    %v155 = vld [vmem:[%s3 + $0x58] sm:$0xff]
    %v156 = vld [vmem:[%s3 + $0x60] sm:$0xff]
    %v157 = vld [vmem:[%s3 + $0x68] sm:$0xff]
    %v158 = vld [vmem:[%s3 + $0x70] sm:$0xff]
    %v159 = vld [vmem:[%s3 + $0x78] sm:$0xff]
    %v160 = vld [vmem:[%s4] sm:$0x1]
    %v162 = vlaneseq
    %v163 = vshrl.u32 %v162, 7
    %v164 = vsub.s32 0, %v163
    %v165 = vrot.slane %v160, %v164
    %167 = vmatprep.subr.mxu0 0.0
    %168 = vmatpush1.msra.mxu0 %v144
    %169 = vmatprep.subr.mxu0 0.0
    %170 = vmatpush1.msra.mxu0 %v145
    %171 = vmatprep.subr.mxu0 0.0
    %172 = vmatpush1.msra.mxu0 %v146
    %173 = vmatprep.subr.mxu0 0.0
    %174 = vmatpush1.msra.mxu0 %v147
    %175 = vmatprep.subr.mxu0 0.0
    %176 = vmatpush1.msra.mxu0 %v148
    %177 = vmatprep.subr.mxu0 0.0
    %178 = vmatpush1.msra.mxu0 %v149
    %179 = vmatprep.subr.mxu0 0.0
    %180 = vmatpush1.msra.mxu0 %v150
    %181 = vmatprep.subr.mxu0 0.0
    %182 = vmatpush1.msra.mxu0 %v151
    %183 = vmatprep.subr.mxu0 0.0
    %184 = vmatpush1.msra.mxu0 %v152
    %185 = vmatprep.subr.mxu0 0.0
    %186 = vmatpush1.msra.mxu0 %v153
    %187 = vmatprep.subr.mxu0 0.0
    %188 = vmatpush1.msra.mxu0 %v154
    %189 = vmatprep.subr.mxu0 0.0
    %190 = vmatpush1.msra.mxu0 %v155
    %191 = vmatprep.subr.mxu0 0.0
    %192 = vmatpush1.msra.mxu0 %v156
    %193 = vmatprep.subr.mxu0 0.0
    %194 = vmatpush1.msra.mxu0 %v157
    %195 = vmatprep.subr.mxu0 0.0
    %196 = vmatpush1.msra.mxu0 %v158
    %197 = vmatprep.subr.mxu0 0.0
    %198 = vmatpush1.msra.mxu0 %v159
    %199 = vmatprep.subr.mxu0 0.0
    %200 = vmatpush1.msra.mxu0 0.0
    %201 = vmatprep.subr.mxu0 0.0
    %202 = vmatpush1.msra.mxu0 0.0
    %203 = vmatprep.subr.mxu0 0.0
    %204 = vmatpush1.msra.mxu0 0.0
    %205 = vmatprep.subr.mxu0 0.0
    %206 = vmatpush1.msra.mxu0 0.0
    %207 = vmatprep.subr.mxu0 0.0
    %208 = vmatpush1.msra.mxu0 0.0
    %209 = vmatprep.subr.mxu0 0.0
    %210 = vmatpush1.msra.mxu0 0.0
    %211 = vmatprep.subr.mxu0 0.0
    %212 = vmatpush1.msra.mxu0 0.0
    %213 = vmatprep.subr.mxu0 0.0
    %214 = vmatpush1.msra.mxu0 0.0
    %215 = vmatprep.subr.mxu0 0.0
    %216 = vmatpush1.msra.mxu0 0.0
    %217 = vmatprep.subr.mxu0 0.0
    %218 = vmatpush1.msra.mxu0 0.0
    %219 = vmatprep.subr.mxu0 0.0
    %220 = vmatpush1.msra.mxu0 0.0
    %221 = vmatprep.subr.mxu0 0.0
    %222 = vmatpush1.msra.mxu0 0.0
    %223 = vmatprep.subr.mxu0 0.0
    %224 = vmatpush1.msra.mxu0 0.0
    %225 = vmatprep.subr.mxu0 0.0
    %226 = vmatpush1.msra.mxu0 0.0
    %227 = vmatprep.subr.mxu0 0.0
    %228 = vmatpush1.msra.mxu0 0.0
    %229 = vmatprep.subr.mxu0 0.0
    %230 = vmatpush1.msra.mxu0 0.0
    %231 = vmatprep.mubr.f32.mxu0 0.0
    %232 = vmatmul.mubr.f32.gmra.mrb[0].mxu0 %v143
    %v233 = vpop.f32.mrb[0].mxu0
    %v234 = vadd.f32 %v165, %v233
    %v235 = vpop.f32.mrb[0].mxu0
    %236 = vdwg.mxu0
    %237 = vst [vmem:[%s15] sm:$0xff] %v234
    %v238 = vld [vmem:[%s5] sm:$0xff]
    %v239 = vld [vmem:[%s5 + $0x8] sm:$0xff]
    %v240 = vld [vmem:[%s5 + $0x10] sm:$0xff]
    %v241 = vld [vmem:[%s5 + $0x18] sm:$0xff]
    %v242 = vld [vmem:[%s5 + $0x20] sm:$0xff]
    %v243 = vld [vmem:[%s5 + $0x28] sm:$0xff]
    %v244 = vld [vmem:[%s5 + $0x30] sm:$0xff]
    %v245 = vld [vmem:[%s5 + $0x38] sm:$0xff]
    %v246 = vld [vmem:[%s6] sm:$0x1]
    %v248 = vlaneseq
    %v249 = vshrl.u32 %v248, 7
    %v250 = vsub.s32 0, %v249
    %v251 = vrot.slane %v246, %v250
    %v254 = vsel %vm69, %v234, 0
    %256 = vmatprep.subr.mxu0 0.0
    %257 = vmatpush1.msra.mxu0 %v238
    %258 = vmatprep.subr.mxu0 0.0
    %259 = vmatpush1.msra.mxu0 %v239
    %260 = vmatprep.subr.mxu0 0.0
    %261 = vmatpush1.msra.mxu0 %v240
    %262 = vmatprep.subr.mxu0 0.0
    %263 = vmatpush1.msra.mxu0 %v241
    %264 = vmatprep.subr.mxu0 0.0
    %265 = vmatpush1.msra.mxu0 %v242
    %266 = vmatprep.subr.mxu0 0.0
    %267 = vmatpush1.msra.mxu0 %v243
    %268 = vmatprep.subr.mxu0 0.0
    %269 = vmatpush1.msra.mxu0 %v244
    %270 = vmatprep.subr.mxu0 0.0
    %271 = vmatpush1.msra.mxu0 %v245
    %272 = vmatprep.subr.mxu0 0.0
    %273 = vmatpush1.msra.mxu0 0.0
    %274 = vmatprep.subr.mxu0 0.0
    %275 = vmatpush1.msra.mxu0 0.0
    %276 = vmatprep.subr.mxu0 0.0
    %277 = vmatpush1.msra.mxu0 0.0
    %278 = vmatprep.subr.mxu0 0.0
    %279 = vmatpush1.msra.mxu0 0.0
    %280 = vmatprep.subr.mxu0 0.0
    %281 = vmatpush1.msra.mxu0 0.0
    %282 = vmatprep.subr.mxu0 0.0
    %283 = vmatpush1.msra.mxu0 0.0
    %284 = vmatprep.subr.mxu0 0.0
    %285 = vmatpush1.msra.mxu0 0.0
    %286 = vmatprep.subr.mxu0 0.0
    %287 = vmatpush1.msra.mxu0 0.0
    %288 = vmatprep.subr.mxu0 0.0
    %289 = vmatpush1.msra.mxu0 0.0
    %290 = vmatprep.subr.mxu0 0.0
    %291 = vmatpush1.msra.mxu0 0.0
    %292 = vmatprep.subr.mxu0 0.0
    %293 = vmatpush1.msra.mxu0 0.0
    %294 = vmatprep.subr.mxu0 0.0
    %295 = vmatpush1.msra.mxu0 0.0
    %296 = vmatprep.subr.mxu0 0.0
    %297 = vmatpush1.msra.mxu0 0.0
    %298 = vmatprep.subr.mxu0 0.0
    %299 = vmatpush1.msra.mxu0 0.0
    %300 = vmatprep.subr.mxu0 0.0
    %301 = vmatpush1.msra.mxu0 0.0
    %302 = vmatprep.subr.mxu0 0.0
    %303 = vmatpush1.msra.mxu0 0.0
    %304 = vmatprep.subr.mxu0 0.0
    %305 = vmatpush1.msra.mxu0 0.0
    %306 = vmatprep.subr.mxu0 0.0
    %307 = vmatpush1.msra.mxu0 0.0
    %308 = vmatprep.subr.mxu0 0.0
    %309 = vmatpush1.msra.mxu0 0.0
    %310 = vmatprep.subr.mxu0 0.0
    %311 = vmatpush1.msra.mxu0 0.0
    %312 = vmatprep.subr.mxu0 0.0
    %313 = vmatpush1.msra.mxu0 0.0
    %314 = vmatprep.subr.mxu0 0.0
    %315 = vmatpush1.msra.mxu0 0.0
    %316 = vmatprep.subr.mxu0 0.0
    %317 = vmatpush1.msra.mxu0 0.0
    %318 = vmatprep.subr.mxu0 0.0
    %319 = vmatpush1.msra.mxu0 0.0
    %320 = vmatprep.mubr.f32.mxu0 0.0
    %321 = vmatmul.mubr.f32.gmra.mrb[0].mxu0 %v254
    %v322 = vpop.f32.mrb[0].mxu0
    %v323 = vadd.f32 %v251, %v322
    %v324 = vpop.f32.mrb[0].mxu0
    %325 = vdwg.mxu0
    %v326 = vld [vmem:[%s7] sm:$0xff]
    %v327 = vld [vmem:[%s7 + $0x8] sm:$0xff]
    %v328 = vld [vmem:[%s7 + $0x10] sm:$0xff]
    %v329 = vld [vmem:[%s7 + $0x18] sm:$0xff]
    %v330 = vld [vmem:[%s7 + $0x20] sm:$0xff]
    %v331 = vld [vmem:[%s7 + $0x28] sm:$0xff]
    %v332 = vld [vmem:[%s7 + $0x30] sm:$0xff]
    %v333 = vld [vmem:[%s7 + $0x38] sm:$0xff]
    %v334 = vld [vmem:[%s8] sm:$0x1]
    %v336 = vlaneseq
    %v337 = vshrl.u32 %v336, 7
    %v338 = vsub.s32 0, %v337
    %v339 = vrot.slane %v334, %v338
    %v342 = vsel %vm69, %v323, 0
    %344 = vmatprep.subr.mxu0 0.0
    %345 = vmatpush1.msra.mxu0 %v326
    %346 = vmatprep.subr.mxu0 0.0
    %347 = vmatpush1.msra.mxu0 %v327
    %348 = vmatprep.subr.mxu0 0.0
    %349 = vmatpush1.msra.mxu0 %v328
    %350 = vmatprep.subr.mxu0 0.0
    %351 = vmatpush1.msra.mxu0 %v329
    %352 = vmatprep.subr.mxu0 0.0
    %353 = vmatpush1.msra.mxu0 %v330
    %354 = vmatprep.subr.mxu0 0.0
    %355 = vmatpush1.msra.mxu0 %v331
    %356 = vmatprep.subr.mxu0 0.0
    %357 = vmatpush1.msra.mxu0 %v332
    %358 = vmatprep.subr.mxu0 0.0
    %359 = vmatpush1.msra.mxu0 %v333
    %360 = vmatprep.subr.mxu0 0.0
    %361 = vmatpush1.msra.mxu0 0.0
    %362 = vmatprep.subr.mxu0 0.0
    %363 = vmatpush1.msra.mxu0 0.0
    %364 = vmatprep.subr.mxu0 0.0
    %365 = vmatpush1.msra.mxu0 0.0
    %366 = vmatprep.subr.mxu0 0.0
    %367 = vmatpush1.msra.mxu0 0.0
    %368 = vmatprep.subr.mxu0 0.0
    %369 = vmatpush1.msra.mxu0 0.0
    %370 = vmatprep.subr.mxu0 0.0
    %371 = vmatpush1.msra.mxu0 0.0
    %372 = vmatprep.subr.mxu0 0.0
    %373 = vmatpush1.msra.mxu0 0.0
    %374 = vmatprep.subr.mxu0 0.0
    %375 = vmatpush1.msra.mxu0 0.0
    %376 = vmatprep.subr.mxu0 0.0
    %377 = vmatpush1.msra.mxu0 0.0
    %378 = vmatprep.subr.mxu0 0.0
    %379 = vmatpush1.msra.mxu0 0.0
    %380 = vmatprep.subr.mxu0 0.0
    %381 = vmatpush1.msra.mxu0 0.0
    %382 = vmatprep.subr.mxu0 0.0
    %383 = vmatpush1.msra.mxu0 0.0
    %384 = vmatprep.subr.mxu0 0.0
    %385 = vmatpush1.msra.mxu0 0.0
    %386 = vmatprep.subr.mxu0 0.0
    %387 = vmatpush1.msra.mxu0 0.0
    %388 = vmatprep.subr.mxu0 0.0
    %389 = vmatpush1.msra.mxu0 0.0
    %390 = vmatprep.subr.mxu0 0.0
    %391 = vmatpush1.msra.mxu0 0.0
    %392 = vmatprep.subr.mxu0 0.0
    %393 = vmatpush1.msra.mxu0 0.0
    %394 = vmatprep.subr.mxu0 0.0
    %395 = vmatpush1.msra.mxu0 0.0
    %396 = vmatprep.subr.mxu0 0.0
    %397 = vmatpush1.msra.mxu0 0.0
    %398 = vmatprep.subr.mxu0 0.0
    %399 = vmatpush1.msra.mxu0 0.0
    %400 = vmatprep.subr.mxu0 0.0
    %401 = vmatpush1.msra.mxu0 0.0
    %402 = vmatprep.subr.mxu0 0.0
    %403 = vmatpush1.msra.mxu0 0.0
    %404 = vmatprep.subr.mxu0 0.0
    %405 = vmatpush1.msra.mxu0 0.0
    %406 = vmatprep.subr.mxu0 0.0
    %407 = vmatpush1.msra.mxu0 0.0
    %408 = vmatprep.mubr.f32.mxu0 0.0
    %409 = vmatmul.mubr.f32.gmra.mrb[0].mxu0 %v342
    %v410 = vpop.f32.mrb[0].mxu0
    %v411 = vadd.f32 %v339, %v410
    %v412 = vpop.f32.mrb[0].mxu0
    %413 = vdwg.mxu0
    %v414 = vld [vmem:[%s9] sm:$0xff]
    %v415 = vld [vmem:[%s9 + $0x8] sm:$0xff]
    %v416 = vld [vmem:[%s9 + $0x10] sm:$0xff]
    %v417 = vld [vmem:[%s9 + $0x18] sm:$0xff]
    %v418 = vld [vmem:[%s9 + $0x20] sm:$0xff]
    %v419 = vld [vmem:[%s9 + $0x28] sm:$0xff]
    %v420 = vld [vmem:[%s9 + $0x30] sm:$0xff]
    %v421 = vld [vmem:[%s9 + $0x38] sm:$0xff]
    %v422 = vld [vmem:[%s10] sm:$0x1]
    %v424 = vlaneseq
    %v425 = vshrl.u32 %v424, 7
    %v426 = vsub.s32 0, %v425
    %v427 = vrot.slane %v422, %v426
    %v430 = vsel %vm69, %v411, 0
    %432 = vmatprep.subr.mxu0 0.0
    %433 = vmatpush1.msra.mxu0 %v414
    %434 = vmatprep.subr.mxu0 0.0
    %435 = vmatpush1.msra.mxu0 %v415
    %436 = vmatprep.subr.mxu0 0.0
    %437 = vmatpush1.msra.mxu0 %v416
    %438 = vmatprep.subr.mxu0 0.0
    %439 = vmatpush1.msra.mxu0 %v417
    %440 = vmatprep.subr.mxu0 0.0
    %441 = vmatpush1.msra.mxu0 %v418
    %442 = vmatprep.subr.mxu0 0.0
    %443 = vmatpush1.msra.mxu0 %v419
    %444 = vmatprep.subr.mxu0 0.0
    %445 = vmatpush1.msra.mxu0 %v420
    %446 = vmatprep.subr.mxu0 0.0
    %447 = vmatpush1.msra.mxu0 %v421
    %448 = vmatprep.subr.mxu0 0.0
    %449 = vmatpush1.msra.mxu0 0.0
    %450 = vmatprep.subr.mxu0 0.0
    %451 = vmatpush1.msra.mxu0 0.0
    %452 = vmatprep.subr.mxu0 0.0
    %453 = vmatpush1.msra.mxu0 0.0
    %454 = vmatprep.subr.mxu0 0.0
    %455 = vmatpush1.msra.mxu0 0.0
    %456 = vmatprep.subr.mxu0 0.0
    %457 = vmatpush1.msra.mxu0 0.0
    %458 = vmatprep.subr.mxu0 0.0
    %459 = vmatpush1.msra.mxu0 0.0
    %460 = vmatprep.subr.mxu0 0.0
    %461 = vmatpush1.msra.mxu0 0.0
    %462 = vmatprep.subr.mxu0 0.0
    %463 = vmatpush1.msra.mxu0 0.0
    %464 = vmatprep.subr.mxu0 0.0
    %465 = vmatpush1.msra.mxu0 0.0
    %466 = vmatprep.subr.mxu0 0.0
    %467 = vmatpush1.msra.mxu0 0.0
    %468 = vmatprep.subr.mxu0 0.0
    %469 = vmatpush1.msra.mxu0 0.0
    %470 = vmatprep.subr.mxu0 0.0
    %471 = vmatpush1.msra.mxu0 0.0
    %472 = vmatprep.subr.mxu0 0.0
    %473 = vmatpush1.msra.mxu0 0.0
    %474 = vmatprep.subr.mxu0 0.0
    %475 = vmatpush1.msra.mxu0 0.0
    %476 = vmatprep.subr.mxu0 0.0
    %477 = vmatpush1.msra.mxu0 0.0
    %478 = vmatprep.subr.mxu0 0.0
    %479 = vmatpush1.msra.mxu0 0.0
    %480 = vmatprep.subr.mxu0 0.0
    %481 = vmatpush1.msra.mxu0 0.0
    %482 = vmatprep.subr.mxu0 0.0
    %483 = vmatpush1.msra.mxu0 0.0
    %484 = vmatprep.subr.mxu0 0.0
    %485 = vmatpush1.msra.mxu0 0.0
    %486 = vmatprep.subr.mxu0 0.0
    %487 = vmatpush1.msra.mxu0 0.0
    %488 = vmatprep.subr.mxu0 0.0
    %489 = vmatpush1.msra.mxu0 0.0
    %490 = vmatprep.subr.mxu0 0.0
    %491 = vmatpush1.msra.mxu0 0.0
    %492 = vmatprep.subr.mxu0 0.0
    %493 = vmatpush1.msra.mxu0 0.0
    %494 = vmatprep.subr.mxu0 0.0
    %495 = vmatpush1.msra.mxu0 0.0
    %496 = vmatprep.mubr.f32.mxu0 0.0
    %497 = vmatmul.mubr.f32.gmra.mrb[0].mxu0 %v430
    %v498 = vpop.f32.mrb[0].mxu0
    %v499 = vadd.f32 %v427, %v498
    %v500 = vpop.f32.mrb[0].mxu0
    %501 = vdwg.mxu0
    %v502 = vld [vmem:[%s11] sm:$0xff]
    %v503 = vld [vmem:[%s11 + $0x8] sm:$0xff]
    %v504 = vld [vmem:[%s11 + $0x10] sm:$0xff]
    %v505 = vld [vmem:[%s11 + $0x18] sm:$0xff]
    %v506 = vld [vmem:[%s11 + $0x20] sm:$0xff]
    %v507 = vld [vmem:[%s11 + $0x28] sm:$0xff]
    %v508 = vld [vmem:[%s11 + $0x30] sm:$0xff]
    %v509 = vld [vmem:[%s11 + $0x38] sm:$0xff]
    %v510 = vld [vmem:[%s12] sm:$0x1]
    %v512 = vlaneseq
    %v513 = vshrl.u32 %v512, 7
    %v514 = vsub.s32 0, %v513
    %v515 = vrot.slane %v510, %v514
    %v518 = vsel %vm69, %v499, 0
    %520 = vmatprep.subr.mxu0 0.0
    %521 = vmatpush1.msra.mxu0 %v502
    %522 = vmatprep.subr.mxu0 0.0
    %523 = vmatpush1.msra.mxu0 %v503
    %524 = vmatprep.subr.mxu0 0.0
    %525 = vmatpush1.msra.mxu0 %v504
    %526 = vmatprep.subr.mxu0 0.0
    %527 = vmatpush1.msra.mxu0 %v505
    %528 = vmatprep.subr.mxu0 0.0
    %529 = vmatpush1.msra.mxu0 %v506
    %530 = vmatprep.subr.mxu0 0.0
    %531 = vmatpush1.msra.mxu0 %v507
    %532 = vmatprep.subr.mxu0 0.0
    %533 = vmatpush1.msra.mxu0 %v508
    %534 = vmatprep.subr.mxu0 0.0
    %535 = vmatpush1.msra.mxu0 %v509
    %536 = vmatprep.subr.mxu0 0.0
    %537 = vmatpush1.msra.mxu0 0.0
    %538 = vmatprep.subr.mxu0 0.0
    %539 = vmatpush1.msra.mxu0 0.0
    %540 = vmatprep.subr.mxu0 0.0
    %541 = vmatpush1.msra.mxu0 0.0
    %542 = vmatprep.subr.mxu0 0.0
    %543 = vmatpush1.msra.mxu0 0.0
    %544 = vmatprep.subr.mxu0 0.0
    %545 = vmatpush1.msra.mxu0 0.0
    %546 = vmatprep.subr.mxu0 0.0
    %547 = vmatpush1.msra.mxu0 0.0
    %548 = vmatprep.subr.mxu0 0.0
    %549 = vmatpush1.msra.mxu0 0.0
    %550 = vmatprep.subr.mxu0 0.0
    %551 = vmatpush1.msra.mxu0 0.0
    %552 = vmatprep.subr.mxu0 0.0
    %553 = vmatpush1.msra.mxu0 0.0
    %554 = vmatprep.subr.mxu0 0.0
    %555 = vmatpush1.msra.mxu0 0.0
    %556 = vmatprep.subr.mxu0 0.0
    %557 = vmatpush1.msra.mxu0 0.0
    %558 = vmatprep.subr.mxu0 0.0
    %559 = vmatpush1.msra.mxu0 0.0
    %560 = vmatprep.subr.mxu0 0.0
    %561 = vmatpush1.msra.mxu0 0.0
    %562 = vmatprep.subr.mxu0 0.0
    %563 = vmatpush1.msra.mxu0 0.0
    %564 = vmatprep.subr.mxu0 0.0
    %565 = vmatpush1.msra.mxu0 0.0
    %566 = vmatprep.subr.mxu0 0.0
    %567 = vmatpush1.msra.mxu0 0.0
    %568 = vmatprep.subr.mxu0 0.0
    %569 = vmatpush1.msra.mxu0 0.0
    %570 = vmatprep.subr.mxu0 0.0
    %571 = vmatpush1.msra.mxu0 0.0
    %572 = vmatprep.subr.mxu0 0.0
    %573 = vmatpush1.msra.mxu0 0.0
    %574 = vmatprep.subr.mxu0 0.0
    %575 = vmatpush1.msra.mxu0 0.0
    %576 = vmatprep.subr.mxu0 0.0
    %577 = vmatpush1.msra.mxu0 0.0
    %578 = vmatprep.subr.mxu0 0.0
    %579 = vmatpush1.msra.mxu0 0.0
    %580 = vmatprep.subr.mxu0 0.0
    %581 = vmatpush1.msra.mxu0 0.0
    %582 = vmatprep.subr.mxu0 0.0
    %583 = vmatpush1.msra.mxu0 0.0
    %584 = vmatprep.mubr.f32.mxu0 0.0
    %585 = vmatmul.mubr.f32.gmra.mrb[0].mxu0 %v518
    %v586 = vpop.f32.mrb[0].mxu0
    %v587 = vadd.f32 %v515, %v586
    %v588 = vpop.f32.mrb[0].mxu0
    %589 = vdwg.mxu0
    %v590 = vmax.f32 %v587, 0.0
    %v591 = vld [vmem:[%s13] sm:$0xff]
    %v592 = vld [vmem:[%s13 + $0x8] sm:$0xff]
    %v593 = vld [vmem:[%s13 + $0x10] sm:$0xff]
    %v594 = vld [vmem:[%s13 + $0x18] sm:$0xff]
    %v595 = vld [vmem:[%s13 + $0x20] sm:$0xff]
    %v596 = vld [vmem:[%s13 + $0x28] sm:$0xff]
    %v597 = vld [vmem:[%s13 + $0x30] sm:$0xff]
    %v598 = vld [vmem:[%s13 + $0x38] sm:$0xff]
    %v599 = vld [vmem:[%s14] sm:$0x1]
    %v601 = vlaneseq
    %v602 = vshrl.u32 %v601, 7
    %v603 = vsub.s32 0, %v602
    %v604 = vrot.slane %v599, %v603
    %v607 = vsel %vm69, %v590, 0
    %609 = vmatprep.subr.mxu0 0.0
    %610 = vmatpush1.msra.mxu0 %v591
    %611 = vmatprep.subr.mxu0 0.0
    %612 = vmatpush1.msra.mxu0 %v592
    %613 = vmatprep.subr.mxu0 0.0
    %614 = vmatpush1.msra.mxu0 %v593
    %615 = vmatprep.subr.mxu0 0.0
    %616 = vmatpush1.msra.mxu0 %v594
    %617 = vmatprep.subr.mxu0 0.0
    %618 = vmatpush1.msra.mxu0 %v595
    %619 = vmatprep.subr.mxu0 0.0
    %620 = vmatpush1.msra.mxu0 %v596
    %621 = vmatprep.subr.mxu0 0.0
    %622 = vmatpush1.msra.mxu0 %v597
    %623 = vmatprep.subr.mxu0 0.0
    %624 = vmatpush1.msra.mxu0 %v598
    %625 = vmatprep.subr.mxu0 0.0
    %626 = vmatpush1.msra.mxu0 0.0
    %627 = vmatprep.subr.mxu0 0.0
    %628 = vmatpush1.msra.mxu0 0.0
    %629 = vmatprep.subr.mxu0 0.0
    %630 = vmatpush1.msra.mxu0 0.0
    %631 = vmatprep.subr.mxu0 0.0
    %632 = vmatpush1.msra.mxu0 0.0
    %633 = vmatprep.subr.mxu0 0.0
    %634 = vmatpush1.msra.mxu0 0.0
    %635 = vmatprep.subr.mxu0 0.0
    %636 = vmatpush1.msra.mxu0 0.0
    %637 = vmatprep.subr.mxu0 0.0
    %638 = vmatpush1.msra.mxu0 0.0
    %639 = vmatprep.subr.mxu0 0.0
    %640 = vmatpush1.msra.mxu0 0.0
    %641 = vmatprep.subr.mxu0 0.0
    %642 = vmatpush1.msra.mxu0 0.0
    %643 = vmatprep.subr.mxu0 0.0
    %644 = vmatpush1.msra.mxu0 0.0
    %645 = vmatprep.subr.mxu0 0.0
    %646 = vmatpush1.msra.mxu0 0.0
    %647 = vmatprep.subr.mxu0 0.0
    %648 = vmatpush1.msra.mxu0 0.0
    %649 = vmatprep.subr.mxu0 0.0
    %650 = vmatpush1.msra.mxu0 0.0
    %651 = vmatprep.subr.mxu0 0.0
    %652 = vmatpush1.msra.mxu0 0.0
    %653 = vmatprep.subr.mxu0 0.0
    %654 = vmatpush1.msra.mxu0 0.0
    %655 = vmatprep.subr.mxu0 0.0
    %656 = vmatpush1.msra.mxu0 0.0
    %657 = vmatprep.subr.mxu0 0.0
    %658 = vmatpush1.msra.mxu0 0.0
    %659 = vmatprep.subr.mxu0 0.0
    %660 = vmatpush1.msra.mxu0 0.0
    %661 = vmatprep.subr.mxu0 0.0
    %662 = vmatpush1.msra.mxu0 0.0
    %663 = vmatprep.subr.mxu0 0.0
    %664 = vmatpush1.msra.mxu0 0.0
    %665 = vmatprep.subr.mxu0 0.0
    %666 = vmatpush1.msra.mxu0 0.0
    %667 = vmatprep.subr.mxu0 0.0
    %668 = vmatpush1.msra.mxu0 0.0
    %669 = vmatprep.subr.mxu0 0.0
    %670 = vmatpush1.msra.mxu0 0.0
    %671 = vmatprep.subr.mxu0 0.0
    %672 = vmatpush1.msra.mxu0 0.0
    %673 = vmatprep.mubr.f32.mxu0 0.0
    %674 = vmatmul.mubr.f32.gmra.mrb[0].mxu0 %v607
    %v675 = vpop.f32.mrb[0].mxu0
    %v676 = vadd.f32 %v604, %v675
    %v677 = vpop.f32.mrb[0].mxu0
    %678 = vdwg.mxu0
    %v679 = vtanh.pop %v676
    %680 = vst.msk [vmem:[#allocation2] sm:$0xff] %vm69, %v679
    // Predicated region
    $region62: #{causal_forward.1} parent=1 // pred_check
      _
    $region63: #{causal_forward.1} parent=1 // pred_check_branch
      %682 = sbr.rel (0) target = $region65
    $region64: #{causal_forward.1} parent=1 // pred_region
      _
    $region65: #{causal_forward.1} parent=1 // pred_fallthru
      _
    // Predicated region
    $region66: #{causal_forward.1} parent=1 // pred_check
      _
    $region67: #{causal_forward.1} parent=1 // pred_check_branch
      %684 = sbr.rel (0) target = $region69
    $region68: #{causal_forward.1} parent=1 // pred_region
      %s686 = ssub.s32 128, 128
      %687 = vsyncadd [#allocation3], %s686
      %s689 = sshll.u32 [#allocation2], 4
      %s690 = int_to_ptr.vmem [resolvable:$true] %s689
      %692 = dma.vmem_to_hbm [thread:$0]  %s690, 128, %s16, [#allocation3]
    $region69: #{causal_forward.1} parent=1 // pred_fallthru
      _
    // Predicated region
    $region70: #{causal_forward.1} parent=1 // pred_check
      _
    $region71: #{causal_forward.1} parent=1 // pred_check_branch
      %694 = sbr.rel (0) target = $region73
    $region72: #{causal_forward.1} parent=1 // pred_region
      _
    $region73: #{causal_forward.1} parent=1 // pred_fallthru
      _
    // Predicated region
    $region74: #{causal_forward.1} parent=1 // pred_check
      _
    $region75: #{causal_forward.1} parent=1 // pred_check_branch
      %696 = sbr.rel (0) target = $region77
    $region76: #{causal_forward.1} parent=1 // pred_region
      %697 = dma.done [#allocation3], 128
    $region77: #{causal_forward.1} parent=1 // pred_fallthru
      _
    %698 = vsyncpa [#allocation3], 1

</llo_original>
